<compile_context>
chip_gen: v6e
topology: v6e:2x2x1
jax: 0.10.0
libtpu: 0.0.40
codegen_flags: <defaults>
</compile_context>

<pallas_src>
import jax
import jax.numpy as jnp
from jax import lax
from jax.experimental import pallas as pl
from jax.experimental.pallas import tpu as pltpu

BN_EPS = 1e-5
_VMEM_LIMIT = 48 * 1024 * 1024    # scoped-VMEM request; safe on v5e/v6e/v7x
_TILE_BUDGET = 20 * 1024 * 1024   # target pipelined working set


# ---------------------------------------------------------------------------
# Pass 1: per-image partial BN statistics of y = Wt @ relu(x), accumulated in
# f32 over the pixel-chunk axis (grid axis 1, "arbitrary").  Each image n owns
# its own (C_out, 1) sum / sum-of-squares block, so grid axis 0 is "parallel"
# (both TensorCores on v7x) and the final reduction over images happens
# outside in f32.
# ---------------------------------------------------------------------------
def _stats_kernel(x_ref, wt_ref, sum_ref, ssq_ref):
    @pl.when(pl.program_id(1) == 0)
    def _init():
        sum_ref[...] = jnp.zeros_like(sum_ref)
        ssq_ref[...] = jnp.zeros_like(ssq_ref)

    x = jnp.maximum(x_ref[...].astype(jnp.float32), 0.0)                # (K, tL) relu, f32
    y = jnp.dot(wt_ref[...], x, preferred_element_type=jnp.float32)     # (C_out, tL)
    sum_ref[...] += jnp.sum(y, axis=1, keepdims=True)                   # (C_out, 1)
    ssq_ref[...] += jnp.sum(y * y, axis=1, keepdims=True)


# ---------------------------------------------------------------------------
# Pass 2: out = (Wt @ relu(x)) * scale + bias   (BN applied in f32 epilogue;
# weights stay unscaled, so no bf16 quantisation of the BN scale).
# ---------------------------------------------------------------------------
def _apply_kernel(x_ref, wt_ref, scale_ref, bias_ref, o_ref):
    x = jnp.maximum(x_ref[...].astype(jnp.float32), 0.0)                # (K, tL)
    y = jnp.dot(wt_ref[...], x, preferred_element_type=jnp.float32)     # (C_out, tL)
    o_ref[...] = (y * scale_ref[...] + bias_ref[...]).astype(o_ref.dtype)


def _pick_tile_l(L, K, C_out, budget=_TILE_BUDGET):
    """Pixels per tile along the Ho*Wo axis.

    Either the full axis (if small or not 128-aligned) or the largest multiple
    of 128 that divides L and keeps the pipelined working set under budget.
    """
    # Per-pixel bytes: double-buffered bf16 x block + double-buffered f32 out
    # block + in-kernel f32 relu(x) temp + f32 matmul result.
    per_col = 2 * (K * 2) + 2 * (C_out * 4) + K * 4 + C_out * 4
    # Fixed: double-buffered f32 weight + scale + bias blocks.
    fixed = 2 * (C_out * K * 4 + 2 * C_out * 4)
    avail = max(budget - fixed, per_col * 128)
    max_cols = avail // per_col
    if L <= max_cols or (L % 128) != 0:
        return L
    tl = 128
    cand = 256
    while cand <= min(L, max_cols):
        if L % cand == 0:
            tl = cand
        cand += 128
    return tl


@jax.jit
def factorized_reduce(x_nchw, w1, w2, gamma, beta):
    """x_nchw: (N, C_in, H, W) f32.
    w1, w2: (C_out//2, C_in) f32 (PyTorch Conv2d 1x1 weight layout, squeezed).
    gamma, beta: (C_out,) f32 BatchNorm affine parameters."""
    N, C_in, H, W = x_nchw.shape
    assert H % 2 == 0 and W % 2 == 0, "factorized reduce expects even spatial dims"
    Ho, Wo = H // 2, W // 2
    L = Ho * Wo
    C_half = w1.shape[0]
    C_out = 2 * C_half
    K = 2 * C_in

    # --- input glue (XLA, fuses under jit): stride-2 subsample of both branch
    # sample grids, fuse branches on the (row) channel axis, bf16 for HBM
    # traffic.  No N<->C transpose needed in this formulation.
    x1 = x_nchw[:, :, ::2, ::2]          # conv_1 sample grid
    x2 = x_nchw[:, :, 1::2, 1::2]        # conv_2 sample grid (x[:,:,1:,1:] stride 2)
    x_cat = jnp.concatenate([x1, x2], axis=1).reshape(N, K, L).astype(jnp.bfloat16)

    # Fused block-diagonal transposed weight: Wt @ [x1; x2] = [w1@x1 ; w2@x2].
    wt = jnp.zeros((C_out, K), jnp.float32)
    wt = wt.at[:C_half, :C_in].set(w1)
    wt = wt.at[C_half:, C_in:].set(w2)

    tL = _pick_tile_l(L, K, C_out)
    grid = (N, L // tL)

    x_spec = pl.BlockSpec((None, K, tL), lambda n, j: (n, 0, j))
    w_spec = pl.BlockSpec((C_out, K), lambda n, j: (0, 0))

    # ---------------- pass 1: per-image BN statistics ----------------
    sums_n, ssq_n = pl.pallas_call(
        _stats_kernel,
        out_shape=(jax.ShapeDtypeStruct((N, C_out, 1), jnp.float32),
                   jax.ShapeDtypeStruct((N, C_out, 1), jnp.float32)),
        grid=grid,
        in_specs=[x_spec, w_spec],
        out_specs=(pl.BlockSpec((None, C_out, 1), lambda n, j: (n, 0, 0)),
                   pl.BlockSpec((None, C_out, 1), lambda n, j: (n, 0, 0))),
        compiler_params=pltpu.CompilerParams(
            dimension_semantics=("parallel", "arbitrary"),
            vmem_limit_bytes=_VMEM_LIMIT),
    )(x_cat, wt)

    # Training-mode BN fold (batch mean, biased variance), all in f32 outside.
    cnt = jnp.float32(N * L)
    sums = jnp.sum(sums_n[:, :, 0], axis=0)
    ssqs = jnp.sum(ssq_n[:, :, 0], axis=0)
    mean = sums / cnt
    var = jnp.maximum(ssqs / cnt - mean * mean, 0.0)   # guard cancellation
    scale = gamma * lax.rsqrt(var + BN_EPS)
    bias = beta - mean * scale
    scale2d = scale.reshape(C_out, 1)
    bias2d = bias.reshape(C_out, 1)

    # ---------------- pass 2: normalized output ----------------
    out = pl.pallas_call(
        _apply_kernel,
        out_shape=jax.ShapeDtypeStruct((N, C_out, L), jnp.float32),
        grid=grid,
        in_specs=[x_spec, w_spec,
                  pl.BlockSpec((C_out, 1), lambda n, j: (0, 0)),
                  pl.BlockSpec((C_out, 1), lambda n, j: (0, 0))],
        out_specs=pl.BlockSpec((None, C_out, tL), lambda n, j: (n, 0, j)),
        compiler_params=pltpu.CompilerParams(
            dimension_semantics=("parallel", "parallel"),   # both TCs on v7x
            vmem_limit_bytes=_VMEM_LIMIT),
    )(x_cat, wt, scale2d, bias2d)

    # Output is already channel-major per image: NCHW is a free reshape.
    return out.reshape(N, C_out, Ho, Wo)


def _reference(x_nchw, w1, w2, gamma, beta, simulate_bf16_input=True):
    """Pure-JAX reference mirroring the PyTorch forward (training-mode BN).
    All matmuls run in f32 (no bf16 dots, so it runs on any backend); with
    simulate_bf16_input=True, x is rounded to bf16 exactly like the kernel's
    HBM-side cast."""
    x1 = x_nchw[:, :, ::2, ::2]
    x2 = x_nchw[:, :, 1::2, 1::2]
    if simulate_bf16_input:
        x1 = x1.astype(jnp.bfloat16).astype(jnp.float32)
        x2 = x2.astype(jnp.bfloat16).astype(jnp.float32)
    x1 = jnp.maximum(x1, 0.0)
    x2 = jnp.maximum(x2, 0.0)
    y1 = jnp.einsum('oc,nchw->nohw', w1, x1)
    y2 = jnp.einsum('oc,nchw->nohw', w2, x2)
    y = jnp.concatenate([y1, y2], axis=1)
    mean = y.mean(axis=(0, 2, 3), keepdims=True)
    var = ((y - mean) ** 2).mean(axis=(0, 2, 3), keepdims=True)
    y_hat = (y - mean) / jnp.sqrt(var + BN_EPS)
    return y_hat * gamma.reshape(1, -1, 1, 1) + beta.reshape(1, -1, 1, 1)


if __name__ == "__main__":
    # FactorizedReduce(C_in=4, C_out=8, affine=True)
    N, C_in, H, W = 2, 4, 16, 16
    C_out = 8
    C_half = C_out // 2

    key = jax.random.PRNGKey(0)
    kx, kw1, kw2 = jax.random.split(key, 3)
    x = jax.random.normal(kx, (N, C_in, H, W), dtype=jnp.float32)
    # PyTorch Conv2d 1x1 weights are (C_half, C_in, 1, 1); stored squeezed.
    w1 = jax.random.normal(kw1, (C_half, C_in), dtype=jnp.float32) * 0.5
    w2 = jax.random.normal(kw2, (C_half, C_in), dtype=jnp.float32) * 0.5
    gamma = jnp.ones((C_out,), dtype=jnp.float32)    # fresh BatchNorm affine init
    beta = jnp.zeros((C_out,), dtype=jnp.float32)

    out = jax.block_until_ready(factorized_reduce(x, w1, w2, gamma, beta))
    assert out.shape == (N, C_out, H // 2, W // 2), out.shape

    # Primary check: reference with the same bf16 input rounding, f32 math.
    ref_matched = jax.block_until_ready(
        _reference(x, w1, w2, gamma, beta, simulate_bf16_input=True))
    err = float(jnp.max(jnp.abs(out - ref_matched)))
    assert jnp.allclose(out, ref_matched, atol=1e-3, rtol=1e-3), err

    # Loose sanity check vs the pure-f32 PyTorch-equivalent forward (only
    # difference is the intentional bf16 rounding of the kernel's input).
    ref_f32 = jax.block_until_ready(
        _reference(x, w1, w2, gamma, beta, simulate_bf16_input=False))
    assert jnp.allclose(out, ref_f32, atol=1e-1, rtol=1e-1), \
        float(jnp.max(jnp.abs(out - ref_f32)))

    print("KERNEL_OK")
</pallas_src>

<mosaic_0001>
module attributes {stable_mosaic.version = 11 : i64} {
  func.func @_stats_kernel(%arg0: i32, %arg1: i32, %arg2: memref<1x8x64xbf16, #tpu.memory_space<vmem>>, %arg3: memref<8x8xf32, #tpu.memory_space<vmem>>, %arg4: memref<1x8x1xf32, #tpu.memory_space<vmem>>, %arg5: memref<1x8x1xf32, #tpu.memory_space<vmem>>) attributes {dimension_semantics = [#tpu.dimension_semantics<parallel>, #tpu.dimension_semantics<arbitrary>], iteration_bounds = array<i64: 2, 1>, scalar_prefetch = 0 : i64, scratch_operands = 0 : i64, tpu.core_type = #tpu.core_type<tc>, window_params = [{transform_indices = @transform_0, window_bounds = array<i64: 1, 8, 64>}, {pipeline_mode = #tpu.pipeline_mode<synchronous>, transform_indices = @transform_1, window_bounds = array<i64: 8, 8>}, {transform_indices = @transform_2, window_bounds = array<i64: 1, 8, 1>}, {transform_indices = @transform_3, window_bounds = array<i64: 1, 8, 1>}]} {
    %c0_i32 = arith.constant 0 : i32
    %0 = arith.cmpi eq, %arg1, %c0_i32 : i32
    %1 = arith.extui %0 : i1 to i32
    %c0_i32_0 = arith.constant 0 : i32
    %2 = arith.cmpi ne, %1, %c0_i32_0 : i32
    scf.if %2 {
      %cst_20 = arith.constant 0.000000e+00 : f32
      %27 = vector.broadcast %cst_20 : f32 to vector<8x1xf32>
      %c0_21 = arith.constant 0 : index
      %c0_22 = arith.constant 0 : index
      %c0_23 = arith.constant 0 : index
      %28 = vector.load %arg4[%c0_21, %c0_22, %c0_23] : memref<1x8x1xf32, #tpu.memory_space<vmem>>, vector<1x8x1xf32>
      %29 = vector.shape_cast %28 : vector<1x8x1xf32> to vector<8x1xf32>
      %30 = vector.shape_cast %27 : vector<8x1xf32> to vector<1x8x1xf32>
      tpu.vector_store %arg4[%c0_21, %c0_22, %c0_23], %30 {strides = array<i32>} : memref<1x8x1xf32, #tpu.memory_space<vmem>>, vector<1x8x1xf32>,
      %cst_24 = arith.constant 0.000000e+00 : f32
      %31 = vector.broadcast %cst_24 : f32 to vector<8x1xf32>
      %c0_25 = arith.constant 0 : index
      %c0_26 = arith.constant 0 : index
      %c0_27 = arith.constant 0 : index
      %32 = vector.load %arg5[%c0_25, %c0_26, %c0_27] : memref<1x8x1xf32, #tpu.memory_space<vmem>>, vector<1x8x1xf32>
      %33 = vector.shape_cast %32 : vector<1x8x1xf32> to vector<8x1xf32>
      %34 = vector.shape_cast %31 : vector<8x1xf32> to vector<1x8x1xf32>
      tpu.vector_store %arg5[%c0_25, %c0_26, %c0_27], %34 {strides = array<i32>} : memref<1x8x1xf32, #tpu.memory_space<vmem>>, vector<1x8x1xf32>,
    } else {
    }
    %c0 = arith.constant 0 : index
    %c0_1 = arith.constant 0 : index
    %c0_2 = arith.constant 0 : index
    %3 = vector.load %arg2[%c0, %c0_1, %c0_2] : memref<1x8x64xbf16, #tpu.memory_space<vmem>>, vector<1x8x64xbf16>
    %4 = vector.shape_cast %3 : vector<1x8x64xbf16> to vector<8x64xbf16>
    %5 = arith.extf %4 : vector<8x64xbf16> to vector<8x64xf32>
    %cst = arith.constant 0.000000e+00 : f32
    %6 = vector.broadcast %cst : f32 to vector<8x64xf32>
    %7 = arith.maximumf %5, %6 : vector<8x64xf32>
    %c0_3 = arith.constant 0 : index
    %c0_4 = arith.constant 0 : index
    %8 = vector.load %arg3[%c0_3, %c0_4] : memref<8x8xf32, #tpu.memory_space<vmem>>, vector<8x8xf32>
    %cst_5 = arith.constant dense<0.000000e+00> : vector<8x64xf32>
    %9 = tpu.matmul %8, %7, %cst_5 {dimension_numbers = #tpu.dot_dimension_numbers<[1], [0], [0], [1], [0, 0, 1, 1], [], []>} : vector<8x8xf32>, vector<8x64xf32>, vector<8x64xf32> -> vector<8x64xf32>
    %c0_6 = arith.constant 0 : index
    %c0_7 = arith.constant 0 : index
    %c0_8 = arith.constant 0 : index
    %10 = vector.load %arg4[%c0_6, %c0_7, %c0_8] : memref<1x8x1xf32, #tpu.memory_space<vmem>>, vector<1x8x1xf32>
    %11 = vector.shape_cast %10 : vector<1x8x1xf32> to vector<8x1xf32>
    %cst_9 = arith.constant dense<0.000000e+00> : vector<8xf32>
    %12 = vector.multi_reduction <add>, %9, %cst_9 [1] : vector<8x64xf32> to vector<8xf32>
    %13 = vector.shape_cast %12 : vector<8xf32> to vector<8x1xf32>
    %14 = arith.addf %11, %13 : vector<8x1xf32>
    %c0_10 = arith.constant 0 : index
    %c0_11 = arith.constant 0 : index
    %c0_12 = arith.constant 0 : index
    %15 = vector.load %arg4[%c0_10, %c0_11, %c0_12] : memref<1x8x1xf32, #tpu.memory_space<vmem>>, vector<1x8x1xf32>
    %16 = vector.shape_cast %15 : vector<1x8x1xf32> to vector<8x1xf32>
    %17 = vector.shape_cast %14 : vector<8x1xf32> to vector<1x8x1xf32>
    tpu.vector_store %arg4[%c0_10, %c0_11, %c0_12], %17 {strides = array<i32>} : memref<1x8x1xf32, #tpu.memory_space<vmem>>, vector<1x8x1xf32>,
    %c0_13 = arith.constant 0 : index
    %c0_14 = arith.constant 0 : index
    %c0_15 = arith.constant 0 : index
    %18 = vector.load %arg5[%c0_13, %c0_14, %c0_15] : memref<1x8x1xf32, #tpu.memory_space<vmem>>, vector<1x8x1xf32>
    %19 = vector.shape_cast %18 : vector<1x8x1xf32> to vector<8x1xf32>
    %20 = arith.mulf %9, %9 : vector<8x64xf32>
    %cst_16 = arith.constant dense<0.000000e+00> : vector<8xf32>
    %21 = vector.multi_reduction <add>, %20, %cst_16 [1] : vector<8x64xf32> to vector<8xf32>
    %22 = vector.shape_cast %21 : vector<8xf32> to vector<8x1xf32>
    %23 = arith.addf %19, %22 : vector<8x1xf32>
    %c0_17 = arith.constant 0 : index
    %c0_18 = arith.constant 0 : index
    %c0_19 = arith.constant 0 : index
    %24 = vector.load %arg5[%c0_17, %c0_18, %c0_19] : memref<1x8x1xf32, #tpu.memory_space<vmem>>, vector<1x8x1xf32>
    %25 = vector.shape_cast %24 : vector<1x8x1xf32> to vector<8x1xf32>
    %26 = vector.shape_cast %23 : vector<8x1xf32> to vector<1x8x1xf32>
    tpu.vector_store %arg5[%c0_17, %c0_18, %c0_19], %26 {strides = array<i32>} : memref<1x8x1xf32, #tpu.memory_space<vmem>>, vector<1x8x1xf32>,
    return
  }
  func.func @transform_0(%arg0: i32, %arg1: i32) -> (i32, i32, i32) {
    %c0_i32 = arith.constant 0 : i32
    %c0_i32_0 = arith.constant 0 : i32
    return %arg0, %c0_i32, %arg1 : i32, i32, i32
  }
  func.func @transform_1(%arg0: i32, %arg1: i32) -> (i32, i32) {
    %c0_i32 = arith.constant 0 : i32
    %c0_i32_0 = arith.constant 0 : i32
    %c0_i32_1 = arith.constant 0 : i32
    return %c0_i32, %c0_i32_0 : i32, i32
  }
  func.func @transform_2(%arg0: i32, %arg1: i32) -> (i32, i32, i32) {
    %c0_i32 = arith.constant 0 : i32
    %c0_i32_0 = arith.constant 0 : i32
    %c0_i32_1 = arith.constant 0 : i32
    return %arg0, %c0_i32, %c0_i32_0 : i32, i32, i32
  }
  func.func @transform_3(%arg0: i32, %arg1: i32) -> (i32, i32, i32) {
    %c0_i32 = arith.constant 0 : i32
    %c0_i32_0 = arith.constant 0 : i32
    %c0_i32_1 = arith.constant 0 : i32
    return %arg0, %c0_i32, %c0_i32_0 : i32, i32, i32
  }
}

module attributes {stable_mosaic.version = 11 : i64} {
  func.func @_apply_kernel(%arg0: i32, %arg1: i32, %arg2: memref<1x8x64xbf16, #tpu.memory_space<vmem>>, %arg3: memref<8x8xf32, #tpu.memory_space<vmem>>, %arg4: memref<8x1xf32, #tpu.memory_space<vmem>>, %arg5: memref<8x1xf32, #tpu.memory_space<vmem>>, %arg6: memref<1x8x64xf32, #tpu.memory_space<vmem>>) attributes {dimension_semantics = [#tpu.dimension_semantics<parallel>, #tpu.dimension_semantics<parallel>], iteration_bounds = array<i64: 2, 1>, scalar_prefetch = 0 : i64, scratch_operands = 0 : i64, tpu.core_type = #tpu.core_type<tc>, window_params = [{transform_indices = @transform_0, window_bounds = array<i64: 1, 8, 64>}, {pipeline_mode = #tpu.pipeline_mode<synchronous>, transform_indices = @transform_1, window_bounds = array<i64: 8, 8>}, {pipeline_mode = #tpu.pipeline_mode<synchronous>, transform_indices = @transform_2, window_bounds = array<i64: 8, 1>}, {pipeline_mode = #tpu.pipeline_mode<synchronous>, transform_indices = @transform_3, window_bounds = array<i64: 8, 1>}, {transform_indices = @transform_4, window_bounds = array<i64: 1, 8, 64>}]} {
    %c0 = arith.constant 0 : index
    %c0_0 = arith.constant 0 : index
    %c0_1 = arith.constant 0 : index
    %0 = vector.load %arg2[%c0, %c0_0, %c0_1] : memref<1x8x64xbf16, #tpu.memory_space<vmem>>, vector<1x8x64xbf16>
    %1 = vector.shape_cast %0 : vector<1x8x64xbf16> to vector<8x64xbf16>
    %2 = arith.extf %1 : vector<8x64xbf16> to vector<8x64xf32>
    %cst = arith.constant 0.000000e+00 : f32
    %3 = vector.broadcast %cst : f32 to vector<8x64xf32>
    %4 = arith.maximumf %2, %3 : vector<8x64xf32>
    %c0_2 = arith.constant 0 : index
    %c0_3 = arith.constant 0 : index
    %5 = vector.load %arg3[%c0_2, %c0_3] : memref<8x8xf32, #tpu.memory_space<vmem>>, vector<8x8xf32>
    %cst_4 = arith.constant dense<0.000000e+00> : vector<8x64xf32>
    %6 = tpu.matmul %5, %4, %cst_4 {dimension_numbers = #tpu.dot_dimension_numbers<[1], [0], [0], [1], [0, 0, 1, 1], [], []>} : vector<8x8xf32>, vector<8x64xf32>, vector<8x64xf32> -> vector<8x64xf32>
    %c0_5 = arith.constant 0 : index
    %c0_6 = arith.constant 0 : index
    %7 = vector.load %arg4[%c0_5, %c0_6] : memref<8x1xf32, #tpu.memory_space<vmem>>, vector<8x1xf32>
    %8 = vector.broadcast %7 : vector<8x1xf32> to vector<8x64xf32>
    %9 = arith.mulf %6, %8 : vector<8x64xf32>
    %c0_7 = arith.constant 0 : index
    %c0_8 = arith.constant 0 : index
    %10 = vector.load %arg5[%c0_7, %c0_8] : memref<8x1xf32, #tpu.memory_space<vmem>>, vector<8x1xf32>
    %11 = vector.broadcast %10 : vector<8x1xf32> to vector<8x64xf32>
    %12 = arith.addf %9, %11 : vector<8x64xf32>
    %c0_9 = arith.constant 0 : index
    %c0_10 = arith.constant 0 : index
    %c0_11 = arith.constant 0 : index
    %13 = vector.load %arg6[%c0_9, %c0_10, %c0_11] : memref<1x8x64xf32, #tpu.memory_space<vmem>>, vector<1x8x64xf32>
    %14 = vector.shape_cast %13 : vector<1x8x64xf32> to vector<8x64xf32>
    %15 = vector.shape_cast %12 : vector<8x64xf32> to vector<1x8x64xf32>
    tpu.vector_store %arg6[%c0_9, %c0_10, %c0_11], %15 {strides = array<i32>} : memref<1x8x64xf32, #tpu.memory_space<vmem>>, vector<1x8x64xf32>,
    return
  }
  func.func @transform_0(%arg0: i32, %arg1: i32) -> (i32, i32, i32) {
    %c0_i32 = arith.constant 0 : i32
    %c0_i32_0 = arith.constant 0 : i32
    return %arg0, %c0_i32, %arg1 : i32, i32, i32
  }
  func.func @transform_1(%arg0: i32, %arg1: i32) -> (i32, i32) {
    %c0_i32 = arith.constant 0 : i32
    %c0_i32_0 = arith.constant 0 : i32
    %c0_i32_1 = arith.constant 0 : i32
    return %c0_i32, %c0_i32_0 : i32, i32
  }
  func.func @transform_2(%arg0: i32, %arg1: i32) -> (i32, i32) {
    %c0_i32 = arith.constant 0 : i32
    %c0_i32_0 = arith.constant 0 : i32
    %c0_i32_1 = arith.constant 0 : i32
    return %c0_i32, %c0_i32_0 : i32, i32
  }
  func.func @transform_3(%arg0: i32, %arg1: i32) -> (i32, i32) {
    %c0_i32 = arith.constant 0 : i32
    %c0_i32_0 = arith.constant 0 : i32
    %c0_i32_1 = arith.constant 0 : i32
    return %c0_i32, %c0_i32_0 : i32, i32
  }
  func.func @transform_4(%arg0: i32, %arg1: i32) -> (i32, i32, i32) {
    %c0_i32 = arith.constant 0 : i32
    %c0_i32_0 = arith.constant 0 : i32
    return %arg0, %c0_i32, %arg1 : i32, i32, i32
  }
}

</mosaic_0001>

<llo_original>
// kernel: factorized_reduce.2
$region0: #{factorized_reduce.2}
  #allocation0 [shape = 'u32[]', space=smem, size = 0x4, offset = 0x4, fixed_abs, tag = 'smem constant byte address 0x4 - core index']
  #allocation1 [shape = 'u32[144,128]{1,0:T(1,128)}', space=vmem, size = 0x12000, scoped, tag = 'internal scratch']
  %s0 = inlined_call_operand.vmem [shape: bf16[2,8,64], index: 0, kind: input, shape index: {}]
  %s1 = inlined_call_operand.vmem [shape: f32[8,8], index: 1, kind: input, shape index: {}]
  %s2 = inlined_call_operand.vmem [shape: f32[2,8,1], index: 2, kind: output, shape index: {0}]
  %s3 = inlined_call_operand.vmem [shape: f32[2,8,1], index: 3, kind: output, shape index: {1}]
  %4 = xla_tuple %s2, %s3
  %s5 = sld [smem:[#allocation0]]
  $region53: #{factorized_reduce.2} parent=0
    _
  %s7 = ssub.s32 1, %s5
  %s8 = scalar_select 0, %s7, %s5
  loop: start=0, step=1, limit=4
  $region2: #{factorized_reduce.2} parent=0 // loop_pre_header
    _
  $region3: #{factorized_reduce.2} parent=0 // loop_header
    %s10 = sphi 0, %s14
    %p11 = scmp.ge.s32.totalorder %s10, 4
    %s17 = sphi 0, %s29
    %s18 = sphi 0, %s25
    %s19 = sphi 0, %s17
    %s20 = sphi 0, %s18
    %s21 = sphi 0, %s19
    %s22 = sphi 0, %s20
    %s34 = sphi 0, %s36
    %s37 = sphi 0, %s34
    %s38 = sphi 0, %s37
    %s54 = sphi 0, %s38
    %s58 = sphi 0, %s58
    %s60 = sphi 0, %s58
    %s61 = sphi 0, %s60
    %s75 = sphi 0, %s61
    %s81 = sphi 0, %s83
    %s84 = sphi 0, %s81
    %s85 = sphi 0, %s84
    %s101 = sphi 0, %s85
    %s107 = sphi 0, %s109
    %s110 = sphi 0, %s107
    %s111 = sphi 0, %s110
    %s127 = sphi 0, %s111
  $region4: #{factorized_reduce.2} parent=0 // loop_header_branch
    %13 = sbr.rel (%p11) target = $region8
  $region5: #{factorized_reduce.2} parent=0 // loop_body
    %s15 = ssub.s32 %s10, 1
    %s16 = ssub.s32 %s10, 2
    %s23 = sadd.s32 1, %s18
    %p24 = scmp.ge.s32.totalorder %s23, 1
    %s25 = scalar_select %p24, 0, %s23
    %s26 = sadd.s32 1, %s17
    %s27 = scalar_select %p24, %s26, %s17
    %p28 = scmp.ge.s32.totalorder %s27, 2
    %s29 = scalar_select %p28, 0, %s27
    %s30 = ssub.s32 %s17, %s29
    %s31 = ssub.s32 %s18, %s25
    %s32 = sor.u32 %s30, %s31
    %p33 = scmp.eq.s32.totalorder %s32, 0
    %s35 = sadd.s32 %s34, 1
    %s36 = scalar_select %p33, %s34, %s35
    %p39 = pneg %p33
    %p40 = scmp.eq.s32.totalorder %s10, 1
    %p41 = por %p39, %p40
    %p42 = scmp.ne.s32.totalorder %s34, %s37
    %p43 = scmp.eq.s32.totalorder %s10, 0
    %p44 = por %p42, %p43
    %p45 = scmp.ne.s32.totalorder %s34, %s37
    %p46 = scmp.eq.s32.totalorder %s15, 1
    %p47 = por %p45, %p46
    %p48 = scmp.ne.s32.totalorder %s37, %s38
    %p49 = scmp.eq.s32.totalorder %s15, 0
    %p50 = por %p48, %p49
    %p51 = scmp.ne.s32.totalorder %s37, %s38
    %p52 = scmp.eq.s32.totalorder %s16, 1
    %p53 = por %p51, %p52
    %p55 = scmp.ne.s32.totalorder %s38, %s54
    %p56 = scmp.eq.s32.totalorder %s16, 0
    %p57 = por %p55, %p56
    %s59 = sadd.s32 %s58, 1
    %p62 = scmp.eq.s32.totalorder %s10, 1
    %p63 = scmp.ne.s32.totalorder %s58, %s60
    %p64 = scmp.eq.s32.totalorder %s10, 0
    %p65 = por %p63, %p64
    %p66 = scmp.ne.s32.totalorder %s58, %s60
    %p67 = scmp.eq.s32.totalorder %s15, 1
    %p68 = por %p66, %p67
    %p69 = scmp.ne.s32.totalorder %s60, %s61
    %p70 = scmp.eq.s32.totalorder %s15, 0
    %p71 = por %p69, %p70
    %p72 = scmp.ne.s32.totalorder %s60, %s61
    %p73 = scmp.eq.s32.totalorder %s16, 1
    %p74 = por %p72, %p73
    %p76 = scmp.ne.s32.totalorder %s61, %s75
    %p77 = scmp.eq.s32.totalorder %s16, 0
    %p78 = por %p76, %p77
    %s79 = ssub.s32 %s17, %s29
    %p80 = scmp.eq.s32.totalorder %s79, 0
    %s82 = sadd.s32 %s81, 1
    %s83 = scalar_select %p80, %s81, %s82
    %p86 = pneg %p80
    %p87 = scmp.eq.s32.totalorder %s10, 1
    %p88 = por %p86, %p87
    %p89 = scmp.ne.s32.totalorder %s81, %s84
    %p90 = scmp.eq.s32.totalorder %s10, 0
    %p91 = por %p89, %p90
    %p92 = scmp.ne.s32.totalorder %s81, %s84
    %p93 = scmp.eq.s32.totalorder %s15, 1
    %p94 = por %p92, %p93
    %p95 = scmp.ne.s32.totalorder %s84, %s85
    %p96 = scmp.eq.s32.totalorder %s15, 0
    %p97 = por %p95, %p96
    %p98 = scmp.ne.s32.totalorder %s84, %s85
    %p99 = scmp.eq.s32.totalorder %s16, 1
    %p100 = por %p98, %p99
    %p102 = scmp.ne.s32.totalorder %s85, %s101
    %p103 = scmp.eq.s32.totalorder %s16, 0
    %p104 = por %p102, %p103
    %s105 = ssub.s32 %s17, %s29
    %p106 = scmp.eq.s32.totalorder %s105, 0
    %s108 = sadd.s32 %s107, 1
    %s109 = scalar_select %p106, %s107, %s108
    %p112 = pneg %p106
    %p113 = scmp.eq.s32.totalorder %s10, 1
    %p114 = por %p112, %p113
    %p115 = scmp.ne.s32.totalorder %s107, %s110
    %p116 = scmp.eq.s32.totalorder %s10, 0
    %p117 = por %p115, %p116
    %p118 = scmp.ne.s32.totalorder %s107, %s110
    %p119 = scmp.eq.s32.totalorder %s15, 1
    %p120 = por %p118, %p119
    %p121 = scmp.ne.s32.totalorder %s110, %s111
    %p122 = scmp.eq.s32.totalorder %s15, 0
    %p123 = por %p121, %p122
    %p124 = scmp.ne.s32.totalorder %s110, %s111
    %p125 = scmp.eq.s32.totalorder %s16, 1
    %p126 = por %p124, %p125
    %p128 = scmp.ne.s32.totalorder %s111, %s127
    %p129 = scmp.eq.s32.totalorder %s16, 0
    %p130 = por %p128, %p129
    %p131 = scmp.le.s32.totalorder 1, %s10
    %p132 = scmp.lt.s32.totalorder %s10, 3
    %p133 = pnand %p131, %p132
    %p134 = pneg %p133
    // Predicated region
    $region9: #{factorized_reduce.2} parent=5 // pred_check
      _
    $region10: #{factorized_reduce.2} parent=5 // pred_check_branch
      %136 = sbr.rel (%p133) target = $region12
    $region11: #{factorized_reduce.2} parent=5 // pred_region
      %s137 = ssub.s32 %s10, 1
      // Predicated region
      $region13: #{factorized_reduce.2} parent=11 // pred_check
        %p138 = pneg %p71
      $region14: #{factorized_reduce.2} parent=11 // pred_check_branch
        %140 = sbr.rel (%p138) target = $region16
      $region15: #{factorized_reduce.2} parent=11 // pred_region
        _
      $region16: #{factorized_reduce.2} parent=11 // pred_fallthru
        _
    $region12: #{factorized_reduce.2} parent=5 // pred_fallthru
      _
    %p141 = scmp.lt.s32.totalorder %s10, 2
    // Predicated region
    $region17: #{factorized_reduce.2} parent=5 // pred_check
      %p142 = pneg %p141
    $region18: #{factorized_reduce.2} parent=5 // pred_check_branch
      %144 = sbr.rel (%p142) target = $region20
    $region19: #{factorized_reduce.2} parent=5 // pred_region
      // Predicated region
      $region21: #{factorized_reduce.2} parent=19 // pred_check
        %p145 = pneg %p44
      $region22: #{factorized_reduce.2} parent=19 // pred_check_branch
        %147 = sbr.rel (%p145) target = $region24
      $region23: #{factorized_reduce.2} parent=19 // pred_region
        %p148 = scmp.lt.s32.totalorder %s17, 1
        %s149 = scalar_select %p148, %s17, 1
        %p150 = scmp.lt.s32.totalorder %s18, 0
        %s151 = scalar_select %p150, %s18, 0
        %s152 = sadd.s32 %s151, %s149
        %s153 = smul.addr %s152, 4
        %s154 = scalar_lea.vmem %s0, %s153
      $region24: #{factorized_reduce.2} parent=19 // pred_fallthru
        _
    $region20: #{factorized_reduce.2} parent=5 // pred_fallthru
      _
    %p155 = scmp.le.s32.totalorder 1, %s10
    %p156 = scmp.lt.s32.totalorder %s10, 3
    %p157 = pnand %p155, %p156
    %p158 = pneg %p157
    // Predicated region
    $region25: #{factorized_reduce.2} parent=5 // pred_check
      _
    $region26: #{factorized_reduce.2} parent=5 // pred_check_branch
      %160 = sbr.rel (%p157) target = $region28
    $region27: #{factorized_reduce.2} parent=5 // pred_region
      %s161 = ssub.s32 %s10, 1
      %p162 = scmp.lt.s32.totalorder %s19, 1
      %s163 = scalar_select %p162, %s19, 1
      %p164 = scmp.lt.s32.totalorder %s20, 0
      %s165 = scalar_select %p164, %s20, 0
      %s166 = sadd.s32 %s165, %s163
      %s167 = smul.addr %s166, 4
      %s168 = scalar_lea.vmem %s0, %s167
      %p169 = pneg %p50
      %p170 = pneg %p47
      %p171 = pneg %p71
      %p172 = pneg %p68
      %p173 = pneg %p97
      %p174 = pneg %p94
      %p175 = scmp.lt.s32.totalorder %s19, 1
      %s176 = scalar_select %p175, %s19, 1
      %s177 = smul.addr %s176, 8
      %s178 = scalar_lea.vmem %s2, %s177
      %p179 = pneg %p123
      %p180 = pneg %p120
      %p181 = scmp.lt.s32.totalorder %s19, 1
      %s182 = scalar_select %p181, %s19, 1
      %s183 = smul.addr %s182, 8
      %s184 = scalar_lea.vmem %s3, %s183
      %p185 = scmp.lt.s32.totalorder %s19, 1
      %s186 = scalar_select %p185, %s19, 1
      %p187 = scmp.lt.s32.totalorder %s20, 0
      %s188 = scalar_select %p187, %s20, 0
      %s189 = sadd.s32 %s188, %s186
      %s190 = smul.addr %s189, 4
      %s191 = scalar_lea.vmem %s0, %s190
      %p192 = scmp.lt.s32.totalorder %s19, 1
      %s193 = scalar_select %p192, %s19, 1
      %s194 = smul.addr %s193, 8
      %s195 = scalar_lea.vmem %s2, %s194
      %p196 = scmp.lt.s32.totalorder %s19, 1
      %s197 = scalar_select %p196, %s19, 1
      %s198 = smul.addr %s197, 8
      %s199 = scalar_lea.vmem %s3, %s198
      %p200 = scmp.eq.s32.totalorder %s20, 0
      // Predicated region
      $region29: #{factorized_reduce.2} parent=27 // pred_check
        %p201 = pneg %p200
      $region30: #{factorized_reduce.2} parent=27 // pred_check_branch
        %203 = sbr.rel (%p201) target = $region32
      $region31: #{factorized_reduce.2} parent=27 // pred_region
        %vm204 = vcmask 7168
        %205 = vst.msk [vmem:[%s195] sm:$0xff] %vm204, 0.0
        %206 = vst.msk [vmem:[%s199] sm:$0xff] %vm204, 0.0
      $region32: #{factorized_reduce.2} parent=27 // pred_fallthru
        _
      %v207 = vld [vmem:[%s191] sm:$0xf]
      %v208 = vunpack.c.l.bf16 %v207
      %v209 = vmax.f32 %v208, 0.0
      %v210 = vld [vmem:[%s1] sm:$0xff]
      %vm211 = vcmask 64512
      %v213 = vsel %vm211, %v210, 0
      %215 = vmatprep.subr.mxu0 0.0
      %216 = vmatpush1.msra.mxu0 0.0
      %217 = vmatprep.subr.mxu0 0.0
      %218 = vmatpush1.msra.mxu0 0.0
      %219 = vmatprep.subr.mxu0 0.0
      %220 = vmatpush1.msra.mxu0 0.0
      %221 = vmatprep.subr.mxu0 0.0
      %222 = vmatpush1.msra.mxu0 0.0
      %223 = vmatprep.subr.mxu0 0.0
      %224 = vmatpush1.msra.mxu0 0.0
      %225 = vmatprep.subr.mxu0 0.0
      %226 = vmatpush1.msra.mxu0 0.0
      %227 = vmatprep.subr.mxu0 0.0
      %228 = vmatpush1.msra.mxu0 0.0
      %229 = vmatprep.subr.mxu0 0.0
      %230 = vmatpush1.msra.mxu0 0.0
      %231 = vmatprep.subr.mxu0 0.0
      %232 = vmatpush1.msra.mxu0 0.0
      %233 = vmatprep.subr.mxu0 0.0
      %234 = vmatpush1.msra.mxu0 0.0
      %235 = vmatprep.subr.mxu0 0.0
      %236 = vmatpush1.msra.mxu0 0.0
      %237 = vmatprep.subr.mxu0 0.0
      %238 = vmatpush1.msra.mxu0 0.0
      %239 = vmatprep.subr.mxu0 0.0
      %240 = vmatpush1.msra.mxu0 0.0
      %241 = vmatprep.subr.mxu0 0.0
      %242 = vmatpush1.msra.mxu0 0.0
      %243 = vmatprep.subr.mxu0 0.0
      %244 = vmatpush1.msra.mxu0 0.0
      %245 = vmatprep.subr.mxu0 0.0
      %246 = vmatpush1.msra.mxu0 %v209
      %247 = vmatprep.subr.mxu0 0.0
      %248 = vmatpush2.msra.mxu0 0.0
      %249 = vmatprep.subr.mxu0 0.0
      %250 = vmatpush2.msra.mxu0 0.0
      %251 = vmatprep.subr.mxu0 0.0
      %252 = vmatpush2.msra.mxu0 0.0
      %253 = vmatprep.subr.mxu0 0.0
      %254 = vmatpush2.msra.mxu0 0.0
      %255 = vmatprep.subr.mxu0 0.0
      %256 = vmatpush2.msra.mxu0 0.0
      %257 = vmatprep.subr.mxu0 0.0
      %258 = vmatpush2.msra.mxu0 0.0
      %259 = vmatprep.subr.mxu0 0.0
      %260 = vmatpush2.msra.mxu0 0.0
      %261 = vmatprep.subr.mxu0 0.0
      %262 = vmatpush2.msra.mxu0 0.0
      %263 = vmatprep.subr.mxu0 0.0
      %264 = vmatpush2.msra.mxu0 0.0
      %265 = vmatprep.subr.mxu0 0.0
      %266 = vmatpush2.msra.mxu0 0.0
      %267 = vmatprep.subr.mxu0 0.0
      %268 = vmatpush2.msra.mxu0 0.0
      %269 = vmatprep.subr.mxu0 0.0
      %270 = vmatpush2.msra.mxu0 0.0
      %271 = vmatprep.subr.mxu0 0.0
      %272 = vmatpush2.msra.mxu0 0.0
      %273 = vmatprep.subr.mxu0 0.0
      %274 = vmatpush2.msra.mxu0 0.0
      %275 = vmatprep.subr.mxu0 0.0
      %276 = vmatpush2.msra.mxu0 0.0
      %277 = vmatprep.subr.mxu0 0.0
      %278 = vmatpush2.msra.mxu0 0.0
      %279 = vmatprep.mubr.f32.mxu0 0.0
      %280 = vmatmul.mubr.f32.gmra.mxu0 %v213
      %v281 = vpop.f32.mrf.mxu0
      %v282 = vadd.f32 0.0, %v281
      %v283 = vpop.f32.mrf.mxu0
      %284 = vdwg.mxu0
      %v285 = vld [vmem:[%s195] sm:$0xff]
      %vm286 = vcmask 523264
      %v287 = vsel %vm286, %v282, 0.0
      %288 = vadd.xlane.f32.xlu0 %v287
      %v289 = vpop.xlane.xlu0 %288
      %v290 = vadd.f32 %v285, %v289
      %vm291 = vcmask 7168
      %292 = vst.msk [vmem:[%s195] sm:$0xff] %vm291, %v290
      %v293 = vld [vmem:[%s199] sm:$0xff]
      %v294 = vmul.f32 %v282, %v282
      %v295 = vsel %vm286, %v294, 0.0
      %296 = vadd.xlane.f32.xlu0 %v295
      %v297 = vpop.xlane.xlu0 %296
      %v298 = vadd.f32 %v293, %v297
      %299 = vst.msk [vmem:[%s199] sm:$0xff] %vm291, %v298
      %p300 = scmp.lt.s32.totalorder %s19, 1
      %s301 = scalar_select %p300, %s19, 1
      %s302 = smul.addr %s301, 8
      %s303 = scalar_lea.vmem %s2, %s302
      %p304 = scmp.lt.s32.totalorder %s19, 1
      %s305 = scalar_select %p304, %s19, 1
      %s306 = smul.addr %s305, 8
      %s307 = scalar_lea.vmem %s3, %s306
      // Predicated region
      $region33: #{factorized_reduce.2} parent=27 // pred_check
        %p308 = pneg %p94
      $region34: #{factorized_reduce.2} parent=27 // pred_check_branch
        %310 = sbr.rel (%p308) target = $region36
      $region35: #{factorized_reduce.2} parent=27 // pred_region
        _
      $region36: #{factorized_reduce.2} parent=27 // pred_fallthru
        _
      // Predicated region
      $region37: #{factorized_reduce.2} parent=27 // pred_check
        %p311 = pneg %p120
      $region38: #{factorized_reduce.2} parent=27 // pred_check_branch
        %313 = sbr.rel (%p311) target = $region40
      $region39: #{factorized_reduce.2} parent=27 // pred_region
        _
      $region40: #{factorized_reduce.2} parent=27 // pred_fallthru
        _
    $region28: #{factorized_reduce.2} parent=5 // pred_fallthru
      _
    %p314 = scmp.le.s32.totalorder 2, %s10
    // Predicated region
    $region41: #{factorized_reduce.2} parent=5 // pred_check
      %p315 = pneg %p314
    $region42: #{factorized_reduce.2} parent=5 // pred_check_branch
      %317 = sbr.rel (%p315) target = $region44
    $region43: #{factorized_reduce.2} parent=5 // pred_region
      %s318 = ssub.s32 %s10, 2
      // Predicated region
      $region45: #{factorized_reduce.2} parent=43 // pred_check
        %p319 = pneg %p100
      $region46: #{factorized_reduce.2} parent=43 // pred_check_branch
        %321 = sbr.rel (%p319) target = $region48
      $region47: #{factorized_reduce.2} parent=43 // pred_region
        %p322 = scmp.lt.s32.totalorder %s21, 1
        %s323 = scalar_select %p322, %s21, 1
        %s324 = smul.addr %s323, 8
        %s325 = scalar_lea.vmem %s2, %s324
      $region48: #{factorized_reduce.2} parent=43 // pred_fallthru
        _
      // Predicated region
      $region49: #{factorized_reduce.2} parent=43 // pred_check
        %p326 = pneg %p126
      $region50: #{factorized_reduce.2} parent=43 // pred_check_branch
        %328 = sbr.rel (%p326) target = $region52
      $region51: #{factorized_reduce.2} parent=43 // pred_region
        %p329 = scmp.lt.s32.totalorder %s21, 1
        %s330 = scalar_select %p329, %s21, 1
        %s331 = smul.addr %s330, 8
        %s332 = scalar_lea.vmem %s3, %s331
      $region52: #{factorized_reduce.2} parent=43 // pred_fallthru
        _
    $region44: #{factorized_reduce.2} parent=5 // pred_fallthru
      _
  $region6: #{factorized_reduce.2} parent=0 // loop_footer
    %s14 = sadd.s32 1, %s10
  $region7: #{factorized_reduce.2} parent=0 // loop_footer_branch
    %9 = sbr.rel target = $region3
  $region8: #{factorized_reduce.2} parent=0 // loop_exit
    _

// kernel: factorized_reduce.3
$region0: #{factorized_reduce.3}
  #allocation0 [shape = 'u32[]', space=smem, size = 0x4, offset = 0x4, fixed_abs, tag = 'smem constant byte address 0x4 - core index']
  #allocation1 [shape = 'u32[144,128]{1,0:T(1,128)}', space=vmem, size = 0x12000, scoped, tag = 'internal scratch']
  %s0 = inlined_call_operand.vmem [shape: bf16[2,8,64], index: 0, kind: input, shape index: {}]
  %s1 = inlined_call_operand.vmem [shape: f32[8,8], index: 1, kind: input, shape index: {}]
  %s2 = inlined_call_operand.vmem [shape: f32[8,1], index: 2, kind: input, shape index: {}]
  %s3 = inlined_call_operand.vmem [shape: f32[8,1], index: 3, kind: input, shape index: {}]
  %s4 = inlined_call_operand.vmem [shape: f32[2,8,64], index: 4, kind: output, shape index: {}]
  %s5 = sld [smem:[#allocation0]]
  $region49: #{factorized_reduce.3} parent=0
    _
  %s7 = ssub.s32 1, %s5
  %s8 = scalar_select 0, %s7, %s5
  loop: start=0, step=1, limit=4
  $region2: #{factorized_reduce.3} parent=0 // loop_pre_header
    _
  $region3: #{factorized_reduce.3} parent=0 // loop_header
    %s10 = sphi 0, %s14
    %p11 = scmp.ge.s32.totalorder %s10, 4
    %s17 = sphi 0, %s29
    %s18 = sphi 0, %s25
    %s19 = sphi 0, %s17
    %s20 = sphi 0, %s18
    %s21 = sphi 0, %s19
    %s22 = sphi 0, %s20
    %s34 = sphi 0, %s36
    %s37 = sphi 0, %s34
    %s38 = sphi 0, %s37
    %s54 = sphi 0, %s38
    %s58 = sphi 0, %s58
    %s60 = sphi 0, %s58
    %s61 = sphi 0, %s60
    %s75 = sphi 0, %s61
    %s79 = sphi 0, %s79
    %s81 = sphi 0, %s79
    %s82 = sphi 0, %s81
    %s96 = sphi 0, %s82
    %s100 = sphi 0, %s100
    %s102 = sphi 0, %s100
    %s103 = sphi 0, %s102
    %s117 = sphi 0, %s103
    %s125 = sphi 0, %s127
    %s128 = sphi 0, %s125
    %s129 = sphi 0, %s128
    %s145 = sphi 0, %s129
  $region4: #{factorized_reduce.3} parent=0 // loop_header_branch
    %13 = sbr.rel (%p11) target = $region8
  $region5: #{factorized_reduce.3} parent=0 // loop_body
    %s15 = ssub.s32 %s10, 1
    %s16 = ssub.s32 %s10, 2
    %s23 = sadd.s32 1, %s18
    %p24 = scmp.ge.s32.totalorder %s23, 1
    %s25 = scalar_select %p24, 0, %s23
    %s26 = sadd.s32 1, %s17
    %s27 = scalar_select %p24, %s26, %s17
    %p28 = scmp.ge.s32.totalorder %s27, 2
    %s29 = scalar_select %p28, 0, %s27
    %s30 = ssub.s32 %s17, %s29
    %s31 = ssub.s32 %s18, %s25
    %s32 = sor.u32 %s30, %s31
    %p33 = scmp.eq.s32.totalorder %s32, 0
    %s35 = sadd.s32 %s34, 1
    %s36 = scalar_select %p33, %s34, %s35
    %p39 = pneg %p33
    %p40 = scmp.eq.s32.totalorder %s10, 1
    %p41 = por %p39, %p40
    %p42 = scmp.ne.s32.totalorder %s34, %s37
    %p43 = scmp.eq.s32.totalorder %s10, 0
    %p44 = por %p42, %p43
    %p45 = scmp.ne.s32.totalorder %s34, %s37
    %p46 = scmp.eq.s32.totalorder %s15, 1
    %p47 = por %p45, %p46
    %p48 = scmp.ne.s32.totalorder %s37, %s38
    %p49 = scmp.eq.s32.totalorder %s15, 0
    %p50 = por %p48, %p49
    %p51 = scmp.ne.s32.totalorder %s37, %s38
    %p52 = scmp.eq.s32.totalorder %s16, 1
    %p53 = por %p51, %p52
    %p55 = scmp.ne.s32.totalorder %s38, %s54
    %p56 = scmp.eq.s32.totalorder %s16, 0
    %p57 = por %p55, %p56
    %s59 = sadd.s32 %s58, 1
    %p62 = scmp.eq.s32.totalorder %s10, 1
    %p63 = scmp.ne.s32.totalorder %s58, %s60
    %p64 = scmp.eq.s32.totalorder %s10, 0
    %p65 = por %p63, %p64
    %p66 = scmp.ne.s32.totalorder %s58, %s60
    %p67 = scmp.eq.s32.totalorder %s15, 1
    %p68 = por %p66, %p67
    %p69 = scmp.ne.s32.totalorder %s60, %s61
    %p70 = scmp.eq.s32.totalorder %s15, 0
    %p71 = por %p69, %p70
    %p72 = scmp.ne.s32.totalorder %s60, %s61
    %p73 = scmp.eq.s32.totalorder %s16, 1
    %p74 = por %p72, %p73
    %p76 = scmp.ne.s32.totalorder %s61, %s75
    %p77 = scmp.eq.s32.totalorder %s16, 0
    %p78 = por %p76, %p77
    %s80 = sadd.s32 %s79, 1
    %p83 = scmp.eq.s32.totalorder %s10, 1
    %p84 = scmp.ne.s32.totalorder %s79, %s81
    %p85 = scmp.eq.s32.totalorder %s10, 0
    %p86 = por %p84, %p85
    %p87 = scmp.ne.s32.totalorder %s79, %s81
    %p88 = scmp.eq.s32.totalorder %s15, 1
    %p89 = por %p87, %p88
    %p90 = scmp.ne.s32.totalorder %s81, %s82
    %p91 = scmp.eq.s32.totalorder %s15, 0
    %p92 = por %p90, %p91
    %p93 = scmp.ne.s32.totalorder %s81, %s82
    %p94 = scmp.eq.s32.totalorder %s16, 1
    %p95 = por %p93, %p94
    %p97 = scmp.ne.s32.totalorder %s82, %s96
    %p98 = scmp.eq.s32.totalorder %s16, 0
    %p99 = por %p97, %p98
    %s101 = sadd.s32 %s100, 1
    %p104 = scmp.eq.s32.totalorder %s10, 1
    %p105 = scmp.ne.s32.totalorder %s100, %s102
    %p106 = scmp.eq.s32.totalorder %s10, 0
    %p107 = por %p105, %p106
    %p108 = scmp.ne.s32.totalorder %s100, %s102
    %p109 = scmp.eq.s32.totalorder %s15, 1
    %p110 = por %p108, %p109
    %p111 = scmp.ne.s32.totalorder %s102, %s103
    %p112 = scmp.eq.s32.totalorder %s15, 0
    %p113 = por %p111, %p112
    %p114 = scmp.ne.s32.totalorder %s102, %s103
    %p115 = scmp.eq.s32.totalorder %s16, 1
    %p116 = por %p114, %p115
    %p118 = scmp.ne.s32.totalorder %s103, %s117
    %p119 = scmp.eq.s32.totalorder %s16, 0
    %p120 = por %p118, %p119
    %s121 = ssub.s32 %s17, %s29
    %s122 = ssub.s32 %s18, %s25
    %s123 = sor.u32 %s121, %s122
    %p124 = scmp.eq.s32.totalorder %s123, 0
    %s126 = sadd.s32 %s125, 1
    %s127 = scalar_select %p124, %s125, %s126
    %p130 = pneg %p124
    %p131 = scmp.eq.s32.totalorder %s10, 1
    %p132 = por %p130, %p131
    %p133 = scmp.ne.s32.totalorder %s125, %s128
    %p134 = scmp.eq.s32.totalorder %s10, 0
    %p135 = por %p133, %p134
    %p136 = scmp.ne.s32.totalorder %s125, %s128
    %p137 = scmp.eq.s32.totalorder %s15, 1
    %p138 = por %p136, %p137
    %p139 = scmp.ne.s32.totalorder %s128, %s129
    %p140 = scmp.eq.s32.totalorder %s15, 0
    %p141 = por %p139, %p140
    %p142 = scmp.ne.s32.totalorder %s128, %s129
    %p143 = scmp.eq.s32.totalorder %s16, 1
    %p144 = por %p142, %p143
    %p146 = scmp.ne.s32.totalorder %s129, %s145
    %p147 = scmp.eq.s32.totalorder %s16, 0
    %p148 = por %p146, %p147
    %p149 = scmp.le.s32.totalorder 1, %s10
    %p150 = scmp.lt.s32.totalorder %s10, 3
    %p151 = pnand %p149, %p150
    %p152 = pneg %p151
    // Predicated region
    $region9: #{factorized_reduce.3} parent=5 // pred_check
      _
    $region10: #{factorized_reduce.3} parent=5 // pred_check_branch
      %154 = sbr.rel (%p151) target = $region12
    $region11: #{factorized_reduce.3} parent=5 // pred_region
      %s155 = ssub.s32 %s10, 1
      // Predicated region
      $region13: #{factorized_reduce.3} parent=11 // pred_check
        %p156 = pneg %p71
      $region14: #{factorized_reduce.3} parent=11 // pred_check_branch
        %158 = sbr.rel (%p156) target = $region16
      $region15: #{factorized_reduce.3} parent=11 // pred_region
        _
      $region16: #{factorized_reduce.3} parent=11 // pred_fallthru
        _
      // Predicated region
      $region17: #{factorized_reduce.3} parent=11 // pred_check
        %p159 = pneg %p92
      $region18: #{factorized_reduce.3} parent=11 // pred_check_branch
        %161 = sbr.rel (%p159) target = $region20
      $region19: #{factorized_reduce.3} parent=11 // pred_region
        _
      $region20: #{factorized_reduce.3} parent=11 // pred_fallthru
        _
      // Predicated region
      $region21: #{factorized_reduce.3} parent=11 // pred_check
        %p162 = pneg %p113
      $region22: #{factorized_reduce.3} parent=11 // pred_check_branch
        %164 = sbr.rel (%p162) target = $region24
      $region23: #{factorized_reduce.3} parent=11 // pred_region
        _
      $region24: #{factorized_reduce.3} parent=11 // pred_fallthru
        _
    $region12: #{factorized_reduce.3} parent=5 // pred_fallthru
      _
    %p165 = scmp.lt.s32.totalorder %s10, 2
    // Predicated region
    $region25: #{factorized_reduce.3} parent=5 // pred_check
      %p166 = pneg %p165
    $region26: #{factorized_reduce.3} parent=5 // pred_check_branch
      %168 = sbr.rel (%p166) target = $region28
    $region27: #{factorized_reduce.3} parent=5 // pred_region
      // Predicated region
      $region29: #{factorized_reduce.3} parent=27 // pred_check
        %p169 = pneg %p44
      $region30: #{factorized_reduce.3} parent=27 // pred_check_branch
        %171 = sbr.rel (%p169) target = $region32
      $region31: #{factorized_reduce.3} parent=27 // pred_region
        %p172 = scmp.lt.s32.totalorder %s17, 1
        %s173 = scalar_select %p172, %s17, 1
        %p174 = scmp.lt.s32.totalorder %s18, 0
        %s175 = scalar_select %p174, %s18, 0
        %s176 = sadd.s32 %s175, %s173
        %s177 = smul.addr %s176, 4
        %s178 = scalar_lea.vmem %s0, %s177
      $region32: #{factorized_reduce.3} parent=27 // pred_fallthru
        _
    $region28: #{factorized_reduce.3} parent=5 // pred_fallthru
      _
    %p179 = scmp.le.s32.totalorder 1, %s10
    %p180 = scmp.lt.s32.totalorder %s10, 3
    %p181 = pnand %p179, %p180
    %p182 = pneg %p181
    // Predicated region
    $region33: #{factorized_reduce.3} parent=5 // pred_check
      _
    $region34: #{factorized_reduce.3} parent=5 // pred_check_branch
      %184 = sbr.rel (%p181) target = $region36
    $region35: #{factorized_reduce.3} parent=5 // pred_region
      %s185 = ssub.s32 %s10, 1
      %p186 = scmp.lt.s32.totalorder %s19, 1
      %s187 = scalar_select %p186, %s19, 1
      %p188 = scmp.lt.s32.totalorder %s20, 0
      %s189 = scalar_select %p188, %s20, 0
      %s190 = sadd.s32 %s189, %s187
      %s191 = smul.addr %s190, 4
      %s192 = scalar_lea.vmem %s0, %s191
      %p193 = pneg %p50
      %p194 = pneg %p47
      %p195 = pneg %p71
      %p196 = pneg %p68
      %p197 = pneg %p92
      %p198 = pneg %p89
      %p199 = pneg %p113
      %p200 = pneg %p110
      %p201 = pneg %p141
      %p202 = pneg %p138
      %p203 = scmp.lt.s32.totalorder %s19, 1
      %s204 = scalar_select %p203, %s19, 1
      %p205 = scmp.lt.s32.totalorder %s20, 0
      %s206 = scalar_select %p205, %s20, 0
      %s207 = sadd.s32 %s206, %s204
      %s208 = smul.addr %s207, 8
      %s209 = scalar_lea.vmem %s4, %s208
      %p210 = scmp.lt.s32.totalorder %s19, 1
      %s211 = scalar_select %p210, %s19, 1
      %p212 = scmp.lt.s32.totalorder %s20, 0
      %s213 = scalar_select %p212, %s20, 0
      %s214 = sadd.s32 %s213, %s211
      %s215 = smul.addr %s214, 4
      %s216 = scalar_lea.vmem %s0, %s215
      %p217 = scmp.lt.s32.totalorder %s19, 1
      %s218 = scalar_select %p217, %s19, 1
      %p219 = scmp.lt.s32.totalorder %s20, 0
      %s220 = scalar_select %p219, %s20, 0
      %s221 = sadd.s32 %s220, %s218
      %s222 = smul.addr %s221, 8
      %s223 = scalar_lea.vmem %s4, %s222
      %v224 = vld [vmem:[%s216] sm:$0xf]
      %v225 = vunpack.c.l.bf16 %v224
      %v226 = vmax.f32 %v225, 0.0
      %v227 = vld [vmem:[%s1] sm:$0xff]
      %vm228 = vcmask 64512
      %v230 = vsel %vm228, %v227, 0
      %232 = vmatprep.subr.mxu0 0.0
      %233 = vmatpush1.msra.mxu0 0.0
      %234 = vmatprep.subr.mxu0 0.0
      %235 = vmatpush1.msra.mxu0 0.0
      %236 = vmatprep.subr.mxu0 0.0
      %237 = vmatpush1.msra.mxu0 0.0
      %238 = vmatprep.subr.mxu0 0.0
      %239 = vmatpush1.msra.mxu0 0.0
      %240 = vmatprep.subr.mxu0 0.0
      %241 = vmatpush1.msra.mxu0 0.0
      %242 = vmatprep.subr.mxu0 0.0
      %243 = vmatpush1.msra.mxu0 0.0
      %244 = vmatprep.subr.mxu0 0.0
      %245 = vmatpush1.msra.mxu0 0.0
      %246 = vmatprep.subr.mxu0 0.0
      %247 = vmatpush1.msra.mxu0 0.0
      %248 = vmatprep.subr.mxu0 0.0
      %249 = vmatpush1.msra.mxu0 0.0
      %250 = vmatprep.subr.mxu0 0.0
      %251 = vmatpush1.msra.mxu0 0.0
      %252 = vmatprep.subr.mxu0 0.0
      %253 = vmatpush1.msra.mxu0 0.0
      %254 = vmatprep.subr.mxu0 0.0
      %255 = vmatpush1.msra.mxu0 0.0
      %256 = vmatprep.subr.mxu0 0.0
      %257 = vmatpush1.msra.mxu0 0.0
      %258 = vmatprep.subr.mxu0 0.0
      %259 = vmatpush1.msra.mxu0 0.0
      %260 = vmatprep.subr.mxu0 0.0
      %261 = vmatpush1.msra.mxu0 0.0
      %262 = vmatprep.subr.mxu0 0.0
      %263 = vmatpush1.msra.mxu0 %v226
      %264 = vmatprep.subr.mxu0 0.0
      %265 = vmatpush2.msra.mxu0 0.0
      %266 = vmatprep.subr.mxu0 0.0
      %267 = vmatpush2.msra.mxu0 0.0
      %268 = vmatprep.subr.mxu0 0.0
      %269 = vmatpush2.msra.mxu0 0.0
      %270 = vmatprep.subr.mxu0 0.0
      %271 = vmatpush2.msra.mxu0 0.0
      %272 = vmatprep.subr.mxu0 0.0
      %273 = vmatpush2.msra.mxu0 0.0
      %274 = vmatprep.subr.mxu0 0.0
      %275 = vmatpush2.msra.mxu0 0.0
      %276 = vmatprep.subr.mxu0 0.0
      %277 = vmatpush2.msra.mxu0 0.0
      %278 = vmatprep.subr.mxu0 0.0
      %279 = vmatpush2.msra.mxu0 0.0
      %280 = vmatprep.subr.mxu0 0.0
      %281 = vmatpush2.msra.mxu0 0.0
      %282 = vmatprep.subr.mxu0 0.0
      %283 = vmatpush2.msra.mxu0 0.0
      %284 = vmatprep.subr.mxu0 0.0
      %285 = vmatpush2.msra.mxu0 0.0
      %286 = vmatprep.subr.mxu0 0.0
      %287 = vmatpush2.msra.mxu0 0.0
      %288 = vmatprep.subr.mxu0 0.0
      %289 = vmatpush2.msra.mxu0 0.0
      %290 = vmatprep.subr.mxu0 0.0
      %291 = vmatpush2.msra.mxu0 0.0
      %292 = vmatprep.subr.mxu0 0.0
      %293 = vmatpush2.msra.mxu0 0.0
      %294 = vmatprep.subr.mxu0 0.0
      %295 = vmatpush2.msra.mxu0 0.0
      %296 = vmatprep.mubr.f32.mxu0 0.0
      %297 = vmatmul.mubr.f32.gmra.mxu0 %v230
      %v298 = vpop.f32.mrf.mxu0
      %v299 = vadd.f32 0.0, %v298
      %v300 = vpop.f32.mrf.mxu0
      %301 = vdwg.mxu0
      %v302 = vld [vmem:[%s2] sm:$0xff]
      %304 = vset.pattern.permute.xlu0 0
      %305 = vperm.xlu0 %304, %v302
      %v306 = vpop.permute.xlu0 %305
      %v308 = vmul.f32 %v299, %v306
      %v309 = vld [vmem:[%s3] sm:$0xff]
      %311 = vset.pattern.permute.xlu0 0
      %312 = vperm.xlu0 %311, %v309
      %v313 = vpop.permute.xlu0 %312
      %v315 = vadd.f32 %v308, %v313
      %vm316 = vcmask 523264
      %317 = vst.msk [vmem:[%s223] sm:$0xff] %vm316, %v315
      %p318 = scmp.lt.s32.totalorder %s19, 1
      %s319 = scalar_select %p318, %s19, 1
      %p320 = scmp.lt.s32.totalorder %s20, 0
      %s321 = scalar_select %p320, %s20, 0
      %s322 = sadd.s32 %s321, %s319
      %s323 = smul.addr %s322, 8
      %s324 = scalar_lea.vmem %s4, %s323
      // Predicated region
      $region37: #{factorized_reduce.3} parent=35 // pred_check
        %p325 = pneg %p138
      $region38: #{factorized_reduce.3} parent=35 // pred_check_branch
        %327 = sbr.rel (%p325) target = $region40
      $region39: #{factorized_reduce.3} parent=35 // pred_region
        _
      $region40: #{factorized_reduce.3} parent=35 // pred_fallthru
        _
    $region36: #{factorized_reduce.3} parent=5 // pred_fallthru
      _
    %p328 = scmp.le.s32.totalorder 2, %s10
    // Predicated region
    $region41: #{factorized_reduce.3} parent=5 // pred_check
      %p329 = pneg %p328
    $region42: #{factorized_reduce.3} parent=5 // pred_check_branch
      %331 = sbr.rel (%p329) target = $region44
    $region43: #{factorized_reduce.3} parent=5 // pred_region
      %s332 = ssub.s32 %s10, 2
      // Predicated region
      $region45: #{factorized_reduce.3} parent=43 // pred_check
        %p333 = pneg %p144
      $region46: #{factorized_reduce.3} parent=43 // pred_check_branch
        %335 = sbr.rel (%p333) target = $region48
      $region47: #{factorized_reduce.3} parent=43 // pred_region
        %p336 = scmp.lt.s32.totalorder %s21, 1
        %s337 = scalar_select %p336, %s21, 1
        %p338 = scmp.lt.s32.totalorder %s22, 0
        %s339 = scalar_select %p338, %s22, 0
        %s340 = sadd.s32 %s339, %s337
        %s341 = smul.addr %s340, 8
        %s342 = scalar_lea.vmem %s4, %s341
      $region48: #{factorized_reduce.3} parent=43 // pred_fallthru
        _
    $region44: #{factorized_reduce.3} parent=5 // pred_fallthru
      _
  $region6: #{factorized_reduce.3} parent=0 // loop_footer
    %s14 = sadd.s32 1, %s10
  $region7: #{factorized_reduce.3} parent=0 // loop_footer_branch
    %9 = sbr.rel target = $region3
  $region8: #{factorized_reduce.3} parent=0 // loop_exit
    _

</llo_original>
